<compile_context>
chip_gen: v6e
topology: v6e:2x2x1
jax: 0.10.0
libtpu: 0.0.40
codegen_flags: <defaults>
</compile_context>

<pallas_src>
import jax
import jax.numpy as jnp
from jax.experimental import pallas as pl
from jax.experimental.pallas import tpu as pltpu


# ---------------------------------------------------------------------------
# Kernels: one per latent mode (no dead compute, no dead HBM writeback).
# ---------------------------------------------------------------------------

def _kernel_final(x_ref, w1_ref, b1_ref, w2_ref, b2_ref, w3t_ref, b3_ref, out_ref):
    """Full forward.  Only the (block_b, 1) result is written to HBM."""
    h1 = jnp.dot(x_ref[...], w1_ref[...], preferred_element_type=jnp.float32)
    h1 = jnp.maximum(h1 + b1_ref[...], 0.0)
    h1 = h1.astype(w2_ref.dtype)
    h2 = jnp.dot(h1, w2_ref[...], preferred_element_type=jnp.float32)
    h2 = jnp.maximum(h2 + b2_ref[...], 0.0)
    # Linear(64, 1): an (tb,64)x(64,1) matmul would waste the MXU width and pay
    # result-FIFO latency -> do it as VPU multiply + cross-lane reduce instead.
    w3_row = w3t_ref[...].astype(jnp.float32)                    # (1, 64)
    y = jnp.sum(h2 * w3_row, axis=-1, keepdims=True) + b3_ref[...]
    out_ref[...] = y.astype(out_ref.dtype)


def _kernel_h1(x_ref, w1_ref, b1_ref, h1_ref):
    """latent=0: only the first Linear + ReLU."""
    h1 = jnp.dot(x_ref[...], w1_ref[...], preferred_element_type=jnp.float32)
    h1_ref[...] = jnp.maximum(h1 + b1_ref[...], 0.0).astype(h1_ref.dtype)


def _kernel_h2(x_ref, w1_ref, b1_ref, w2_ref, b2_ref, h2_ref):
    """latent=1: first two Linear + ReLU layers."""
    h1 = jnp.dot(x_ref[...], w1_ref[...], preferred_element_type=jnp.float32)
    h1 = jnp.maximum(h1 + b1_ref[...], 0.0).astype(w2_ref.dtype)
    h2 = jnp.dot(h1, w2_ref[...], preferred_element_type=jnp.float32)
    h2_ref[...] = jnp.maximum(h2 + b2_ref[...], 0.0).astype(h2_ref.dtype)


# ---------------------------------------------------------------------------
# Wrapper
# ---------------------------------------------------------------------------

def _round_up(x, m):
    return (x + m - 1) // m * m


def _default_block_b(batch):
    # Big tiles amortize the ~0.35us/step pipeline overhead; cap at 1024 rows so
    # double-buffered tiles stay well under v5e's 16 MiB scoped-VMEM default.
    if batch > 1024:
        return 1024
    if batch >= 512:
        # >= 2 grid steps so v7x's two TensorCores both get work.
        return _round_up((batch + 1) // 2, 8)
    return _round_up(batch, 8)


def bone_model_forward(x, params, latent=None, *, block_b=None, compute_dtype=None):
    """Pallas forward of BoneModel.

    params = (w1, b1, w2, b2, w3, b3) with weights stored (in_features, out_features).
    """
    # Validate latent BEFORE launching any compute.
    if latent is not None and latent not in (0, 1):
        raise ValueError('Invald interal layer requested')

    w1, b1, w2, b2, w3, b3 = params
    batch, n_inp = x.shape
    n_h1 = w1.shape[1]          # 128
    n_h2 = w2.shape[1]          # 64

    # Optional bf16 compute path (v6e/v7x native-bf16 MXU). Biases / accum stay f32.
    if compute_dtype is not None:
        x = x.astype(compute_dtype)
        w1 = w1.astype(compute_dtype)
        w2 = w2.astype(compute_dtype)
        w3 = w3.astype(compute_dtype)
    act_dtype = jnp.float32 if compute_dtype is None else compute_dtype

    if block_b is None:
        block_b = _default_block_b(batch)
    b_pad = _round_up(batch, block_b)
    if b_pad != batch:
        x = jnp.pad(x, ((0, b_pad - batch), (0, 0)))
    grid = (b_pad // block_b,)

    x_spec = pl.BlockSpec((block_b, n_inp), lambda i: (i, 0))

    def rep(shape):             # weights / biases replicated across grid steps
        return pl.BlockSpec(shape, lambda i: (0, 0))

    def out_spec(n_out):
        return pl.BlockSpec((block_b, n_out), lambda i: (i, 0))

    compiler_params = pltpu.CompilerParams(dimension_semantics=("parallel",))

    if latent is None:
        w3t = w3.reshape(1, n_h2)       # (64,1) -> (1,64) row for the VPU reduce
        out = pl.pallas_call(
            _kernel_final,
            out_shape=jax.ShapeDtypeStruct((b_pad, 1), jnp.float32),
            grid_spec=pltpu.PrefetchScalarGridSpec(
                num_scalar_prefetch=0,
                grid=grid,
                in_specs=[
                    x_spec,
                    rep((n_inp, n_h1)), rep((1, n_h1)),
                    rep((n_h1, n_h2)), rep((1, n_h2)),
                    rep((1, n_h2)), rep((1, 1)),
                ],
                out_specs=out_spec(1),
            ),
            compiler_params=compiler_params,
        )(x, w1, b1, w2, b2, w3t, b3)
    elif latent == 0:
        out = pl.pallas_call(
            _kernel_h1,
            out_shape=jax.ShapeDtypeStruct((b_pad, n_h1), act_dtype),
            grid_spec=pltpu.PrefetchScalarGridSpec(
                num_scalar_prefetch=0,
                grid=grid,
                in_specs=[x_spec, rep((n_inp, n_h1)), rep((1, n_h1))],
                out_specs=out_spec(n_h1),
            ),
            compiler_params=compiler_params,
        )(x, w1, b1)
    else:  # latent == 1
        out = pl.pallas_call(
            _kernel_h2,
            out_shape=jax.ShapeDtypeStruct((b_pad, n_h2), act_dtype),
            grid_spec=pltpu.PrefetchScalarGridSpec(
                num_scalar_prefetch=0,
                grid=grid,
                in_specs=[x_spec,
                          rep((n_inp, n_h1)), rep((1, n_h1)),
                          rep((n_h1, n_h2)), rep((1, n_h2))],
                out_specs=out_spec(n_h2),
            ),
            compiler_params=compiler_params,
        )(x, w1, b1, w2, b2)

    if b_pad != batch:
        out = out[:batch]
    return out


# ---------------------------------------------------------------------------
# Reference + deterministic init + demo
# ---------------------------------------------------------------------------

def init_params(key, n_inp):
    """Deterministic init (uniform, matching nn.Linear fan-in scaling)."""
    def linear(k, fan_in, fan_out):
        kw, kb = jax.random.split(k)
        bound = 1.0 / jnp.sqrt(fan_in)
        w = jax.random.uniform(kw, (fan_in, fan_out), jnp.float32, -bound, bound)
        b = jax.random.uniform(kb, (1, fan_out), jnp.float32, -bound, bound)
        return w, b

    k1, k2, k3 = jax.random.split(key, 3)
    w1, b1 = linear(k1, n_inp, 128)
    w2, b2 = linear(k2, 128, 64)
    w3, b3 = linear(k3, 64, 1)
    return (w1, b1, w2, b2, w3, b3)


def reference_forward(x, params, latent=None):
    w1, b1, w2, b2, w3, b3 = params
    h1 = jnp.maximum(x @ w1 + b1, 0.0)
    if latent == 0:
        return h1
    h2 = jnp.maximum(h1 @ w2 + b2, 0.0)
    if latent == 1:
        return h2
    return h2 @ w3 + b3


if __name__ == "__main__":
    key = jax.random.PRNGKey(0)
    kx, kp = jax.random.split(key)

    B, n_inp = 16, 32
    x = jax.random.normal(kx, (B, n_inp), jnp.float32)
    params = init_params(kp, n_inp)

    # latent=None -> final (B, 1) output (h1/h2 never touch HBM)
    out = jax.block_until_ready(bone_model_forward(x, params, latent=None))
    assert out.shape == (B, 1)
    assert jnp.allclose(out, reference_forward(x, params, latent=None),
                        atol=1e-5, rtol=1e-5)

    # latent=0 / latent=1 intermediate activations (downstream layers skipped)
    h1 = jax.block_until_ready(bone_model_forward(x, params, latent=0))
    h2 = jax.block_until_ready(bone_model_forward(x, params, latent=1))
    assert h1.shape == (B, 128) and h2.shape == (B, 64)
    assert jnp.allclose(h1, reference_forward(x, params, latent=0), atol=1e-5, rtol=1e-5)
    assert jnp.allclose(h2, reference_forward(x, params, latent=1), atol=1e-5, rtol=1e-5)

    # bf16 compute path (v6e/v7x native MXU dtype); f32 accumulation, loose tolerance.
    out_bf16 = jax.block_until_ready(
        bone_model_forward(x, params, latent=None, compute_dtype=jnp.bfloat16))
    assert out_bf16.shape == (B, 1)
    assert jnp.allclose(out_bf16, reference_forward(x, params, latent=None),
                        atol=3e-2, rtol=3e-2)

    print("KERNEL_OK")
</pallas_src>

<mosaic_0001>
module attributes {stable_mosaic.version = 11 : i64} {
  func.func @_kernel_final(%arg0: i32, %arg1: memref<16x32xf32, #tpu.memory_space<vmem>>, %arg2: memref<32x128xf32, #tpu.memory_space<vmem>>, %arg3: memref<1x128xf32, #tpu.memory_space<vmem>>, %arg4: memref<128x64xf32, #tpu.memory_space<vmem>>, %arg5: memref<1x64xf32, #tpu.memory_space<vmem>>, %arg6: memref<1x64xf32, #tpu.memory_space<vmem>>, %arg7: memref<1x1xf32, #tpu.memory_space<vmem>>, %arg8: memref<16x1xf32, #tpu.memory_space<vmem>>) attributes {dimension_semantics = [#tpu.dimension_semantics<parallel>], iteration_bounds = array<i64: 1>, scalar_prefetch = 0 : i64, scratch_operands = 0 : i64, tpu.core_type = #tpu.core_type<tc>, window_params = [{transform_indices = @transform_0, window_bounds = array<i64: 16, 32>}, {pipeline_mode = #tpu.pipeline_mode<synchronous>, transform_indices = @transform_1, window_bounds = array<i64: 32, 128>}, {pipeline_mode = #tpu.pipeline_mode<synchronous>, transform_indices = @transform_2, window_bounds = array<i64: 1, 128>}, {pipeline_mode = #tpu.pipeline_mode<synchronous>, transform_indices = @transform_3, window_bounds = array<i64: 128, 64>}, {pipeline_mode = #tpu.pipeline_mode<synchronous>, transform_indices = @transform_4, window_bounds = array<i64: 1, 64>}, {pipeline_mode = #tpu.pipeline_mode<synchronous>, transform_indices = @transform_5, window_bounds = array<i64: 1, 64>}, {pipeline_mode = #tpu.pipeline_mode<synchronous>, transform_indices = @transform_6, window_bounds = array<i64: 1, 1>}, {transform_indices = @transform_7, window_bounds = array<i64: 16, 1>}]} {
    %c0 = arith.constant 0 : index
    %c0_0 = arith.constant 0 : index
    %0 = vector.load %arg1[%c0, %c0_0] : memref<16x32xf32, #tpu.memory_space<vmem>>, vector<16x32xf32>
    %c0_1 = arith.constant 0 : index
    %c0_2 = arith.constant 0 : index
    %1 = vector.load %arg2[%c0_1, %c0_2] : memref<32x128xf32, #tpu.memory_space<vmem>>, vector<32x128xf32>
    %cst = arith.constant dense<0.000000e+00> : vector<16x128xf32>
    %2 = tpu.matmul %0, %1, %cst {dimension_numbers = #tpu.dot_dimension_numbers<[1], [0], [0], [1], [0, 0, 1, 1], [], []>} : vector<16x32xf32>, vector<32x128xf32>, vector<16x128xf32> -> vector<16x128xf32>
    %c0_3 = arith.constant 0 : index
    %c0_4 = arith.constant 0 : index
    %3 = vector.load %arg3[%c0_3, %c0_4] : memref<1x128xf32, #tpu.memory_space<vmem>>, vector<1x128xf32>
    %4 = vector.broadcast %3 : vector<1x128xf32> to vector<16x128xf32>
    %5 = arith.addf %2, %4 : vector<16x128xf32>
    %cst_5 = arith.constant 0.000000e+00 : f32
    %6 = vector.broadcast %cst_5 : f32 to vector<16x128xf32>
    %7 = arith.maximumf %5, %6 : vector<16x128xf32>
    %c0_6 = arith.constant 0 : index
    %c0_7 = arith.constant 0 : index
    %8 = vector.load %arg4[%c0_6, %c0_7] : memref<128x64xf32, #tpu.memory_space<vmem>>, vector<128x64xf32>
    %cst_8 = arith.constant dense<0.000000e+00> : vector<16x64xf32>
    %9 = tpu.matmul %7, %8, %cst_8 {dimension_numbers = #tpu.dot_dimension_numbers<[1], [0], [0], [1], [0, 0, 1, 1], [], []>} : vector<16x128xf32>, vector<128x64xf32>, vector<16x64xf32> -> vector<16x64xf32>
    %c0_9 = arith.constant 0 : index
    %c0_10 = arith.constant 0 : index
    %10 = vector.load %arg5[%c0_9, %c0_10] : memref<1x64xf32, #tpu.memory_space<vmem>>, vector<1x64xf32>
    %11 = vector.broadcast %10 : vector<1x64xf32> to vector<16x64xf32>
    %12 = arith.addf %9, %11 : vector<16x64xf32>
    %cst_11 = arith.constant 0.000000e+00 : f32
    %13 = vector.broadcast %cst_11 : f32 to vector<16x64xf32>
    %14 = arith.maximumf %12, %13 : vector<16x64xf32>
    %c0_12 = arith.constant 0 : index
    %c0_13 = arith.constant 0 : index
    %15 = vector.load %arg6[%c0_12, %c0_13] : memref<1x64xf32, #tpu.memory_space<vmem>>, vector<1x64xf32>
    %16 = vector.broadcast %15 : vector<1x64xf32> to vector<16x64xf32>
    %17 = arith.mulf %14, %16 : vector<16x64xf32>
    %cst_14 = arith.constant dense<0.000000e+00> : vector<16xf32>
    %18 = vector.multi_reduction <add>, %17, %cst_14 [1] : vector<16x64xf32> to vector<16xf32>
    %19 = vector.shape_cast %18 : vector<16xf32> to vector<16x1xf32>
    %c0_15 = arith.constant 0 : index
    %c0_16 = arith.constant 0 : index
    %20 = vector.load %arg7[%c0_15, %c0_16] : memref<1x1xf32, #tpu.memory_space<vmem>>, vector<1x1xf32>
    %21 = vector.broadcast %20 : vector<1x1xf32> to vector<16x1xf32>
    %22 = arith.addf %19, %21 : vector<16x1xf32>
    %c0_17 = arith.constant 0 : index
    %c0_18 = arith.constant 0 : index
    %23 = vector.load %arg8[%c0_17, %c0_18] : memref<16x1xf32, #tpu.memory_space<vmem>>, vector<16x1xf32>
    tpu.vector_store %arg8[%c0_17, %c0_18], %22 {strides = array<i32>} : memref<16x1xf32, #tpu.memory_space<vmem>>, vector<16x1xf32>,
    return
  }
  func.func @transform_0(%arg0: i32) -> (i32, i32) {
    %c0_i32 = arith.constant 0 : i32
    %c0_i32_0 = arith.constant 0 : i32
    return %arg0, %c0_i32 : i32, i32
  }
  func.func @transform_1(%arg0: i32) -> (i32, i32) {
    %c0_i32 = arith.constant 0 : i32
    %c0_i32_0 = arith.constant 0 : i32
    %c0_i32_1 = arith.constant 0 : i32
    return %c0_i32, %c0_i32_0 : i32, i32
  }
  func.func @transform_2(%arg0: i32) -> (i32, i32) {
    %c0_i32 = arith.constant 0 : i32
    %c0_i32_0 = arith.constant 0 : i32
    %c0_i32_1 = arith.constant 0 : i32
    return %c0_i32, %c0_i32_0 : i32, i32
  }
  func.func @transform_3(%arg0: i32) -> (i32, i32) {
    %c0_i32 = arith.constant 0 : i32
    %c0_i32_0 = arith.constant 0 : i32
    %c0_i32_1 = arith.constant 0 : i32
    return %c0_i32, %c0_i32_0 : i32, i32
  }
  func.func @transform_4(%arg0: i32) -> (i32, i32) {
    %c0_i32 = arith.constant 0 : i32
    %c0_i32_0 = arith.constant 0 : i32
    %c0_i32_1 = arith.constant 0 : i32
    return %c0_i32, %c0_i32_0 : i32, i32
  }
  func.func @transform_5(%arg0: i32) -> (i32, i32) {
    %c0_i32 = arith.constant 0 : i32
    %c0_i32_0 = arith.constant 0 : i32
    %c0_i32_1 = arith.constant 0 : i32
    return %c0_i32, %c0_i32_0 : i32, i32
  }
  func.func @transform_6(%arg0: i32) -> (i32, i32) {
    %c0_i32 = arith.constant 0 : i32
    %c0_i32_0 = arith.constant 0 : i32
    %c0_i32_1 = arith.constant 0 : i32
    return %c0_i32, %c0_i32_0 : i32, i32
  }
  func.func @transform_7(%arg0: i32) -> (i32, i32) {
    %c0_i32 = arith.constant 0 : i32
    %c0_i32_0 = arith.constant 0 : i32
    return %arg0, %c0_i32 : i32, i32
  }
}

</mosaic_0001>

<llo_original>
// kernel: tpu_custom_call.1
$region0: #{tpu_custom_call.1}
  #allocation0 [shape = 'u32[]', space=smem, size = 0x4, offset = 0x4, fixed_abs, tag = 'smem constant byte address 0x4 - core index']
  #allocation1 [shape = 'u32[144,128]{1,0:T(1,128)}', space=vmem, size = 0x12000, scoped, tag = 'internal scratch']
  #allocation2 [shape = 'f32[1,1]{1,0:T(1,128)S(1)}', space=vmem, size = 0x200, scoped, tag = 'scoped memory for tpu_custom_call.1']
  %s0 = inlined_call_operand.vmem [shape: f32[16,32], index: 0, kind: input, shape index: {}]
  %s1 = inlined_call_operand.vmem [shape: f32[32,128], index: 1, kind: input, shape index: {}]
  %s2 = inlined_call_operand.vmem [shape: f32[1,128], index: 2, kind: input, shape index: {}]
  %s3 = inlined_call_operand.vmem [shape: f32[128,64], index: 3, kind: input, shape index: {}]
  %s4 = inlined_call_operand.vmem [shape: f32[1,64], index: 4, kind: input, shape index: {}]
  %s5 = inlined_call_operand.vmem [shape: f32[1,64], index: 5, kind: input, shape index: {}]
  %s6 = inlined_call_operand.<no memory space> [shape: f32[1,1], index: 6, kind: input, shape index: {}]
  %s7 = inlined_call_operand.vmem [shape: f32[16,1], index: 7, kind: output, shape index: {}]
  %s8 = sld [smem:[#allocation0]]
  $region38: #{tpu_custom_call.1} parent=0
    _
  %s10 = ssub.s32 1, %s8
  %s11 = scalar_select 0, %s10, %s8
  %v12 = vstv %s6
  %13 = vst [vmem:[#allocation2] sm:$0x1] %v12
  // Predicated region
  $region2: #{tpu_custom_call.1} parent=0 // pred_check
    _
  $region3: #{tpu_custom_call.1} parent=0 // pred_check_branch
    %15 = sbr.rel (0) target = $region5
  $region4: #{tpu_custom_call.1} parent=0 // pred_region
    _
  $region5: #{tpu_custom_call.1} parent=0 // pred_fallthru
    _
  // Predicated region
  $region6: #{tpu_custom_call.1} parent=0 // pred_check
    _
  $region7: #{tpu_custom_call.1} parent=0 // pred_check_branch
    %17 = sbr.rel (0) target = $region9
  $region8: #{tpu_custom_call.1} parent=0 // pred_region
    _
  $region9: #{tpu_custom_call.1} parent=0 // pred_fallthru
    _
  // Predicated region
  $region10: #{tpu_custom_call.1} parent=0 // pred_check
    _
  $region11: #{tpu_custom_call.1} parent=0 // pred_check_branch
    %19 = sbr.rel (0) target = $region13
  $region12: #{tpu_custom_call.1} parent=0 // pred_region
    _
  $region13: #{tpu_custom_call.1} parent=0 // pred_fallthru
    _
  // Predicated region
  $region14: #{tpu_custom_call.1} parent=0 // pred_check
    _
  $region15: #{tpu_custom_call.1} parent=0 // pred_check_branch
    %21 = sbr.rel (0) target = $region17
  $region16: #{tpu_custom_call.1} parent=0 // pred_region
    _
  $region17: #{tpu_custom_call.1} parent=0 // pred_fallthru
    _
  // Predicated region
  $region18: #{tpu_custom_call.1} parent=0 // pred_check
    _
  $region19: #{tpu_custom_call.1} parent=0 // pred_check_branch
    %23 = sbr.rel (0) target = $region21
  $region20: #{tpu_custom_call.1} parent=0 // pred_region
    _
  $region21: #{tpu_custom_call.1} parent=0 // pred_fallthru
    _
  // Predicated region
  $region22: #{tpu_custom_call.1} parent=0 // pred_check
    _
  $region23: #{tpu_custom_call.1} parent=0 // pred_check_branch
    %25 = sbr.rel (0) target = $region25
  $region24: #{tpu_custom_call.1} parent=0 // pred_region
    _
  $region25: #{tpu_custom_call.1} parent=0 // pred_fallthru
    _
  // Predicated region
  $region26: #{tpu_custom_call.1} parent=0 // pred_check
    _
  $region27: #{tpu_custom_call.1} parent=0 // pred_check_branch
    %27 = sbr.rel (0) target = $region29
  $region28: #{tpu_custom_call.1} parent=0 // pred_region
    _
  $region29: #{tpu_custom_call.1} parent=0 // pred_fallthru
    _
  %v28 = vld [vmem:[%s0] sm:$0xff]
  %v29 = vld [vmem:[%s0 + $0x8] sm:$0xff]
  %v30 = vld [vmem:[%s1] sm:$0xff]
  %v31 = vld [vmem:[%s1 + $0x8] sm:$0xff]
  %v32 = vld [vmem:[%s1 + $0x10] sm:$0xff]
  %v33 = vld [vmem:[%s1 + $0x18] sm:$0xff]
  %v34 = vld [vmem:[%s2] sm:$0x1]
  %v36 = vlaneseq
  %v37 = vshrl.u32 %v36, 7
  %v38 = vsub.s32 0, %v37
  %v39 = vrot.slane %v34, %v38
  %vm41 = vcmask 261120
  %v43 = vsel %vm41, %v28, 0
  %v46 = vsel %vm41, %v29, 0
  %48 = vmatprep.subr.mxu0 0.0
  %49 = vmatpush1.msra.mxu0 0.0
  %50 = vmatprep.subr.mxu0 0.0
  %51 = vmatpush1.msra.mxu0 0.0
  %52 = vmatprep.subr.mxu0 0.0
  %53 = vmatpush1.msra.mxu0 0.0
  %54 = vmatprep.subr.mxu0 0.0
  %55 = vmatpush1.msra.mxu0 0.0
  %56 = vmatprep.subr.mxu0 0.0
  %57 = vmatpush1.msra.mxu0 0.0
  %58 = vmatprep.subr.mxu0 0.0
  %59 = vmatpush1.msra.mxu0 0.0
  %60 = vmatprep.subr.mxu0 0.0
  %61 = vmatpush1.msra.mxu0 0.0
  %62 = vmatprep.subr.mxu0 0.0
  %63 = vmatpush1.msra.mxu0 0.0
  %64 = vmatprep.subr.mxu0 0.0
  %65 = vmatpush1.msra.mxu0 0.0
  %66 = vmatprep.subr.mxu0 0.0
  %67 = vmatpush1.msra.mxu0 0.0
  %68 = vmatprep.subr.mxu0 0.0
  %69 = vmatpush1.msra.mxu0 0.0
  %70 = vmatprep.subr.mxu0 0.0
  %71 = vmatpush1.msra.mxu0 0.0
  %72 = vmatprep.subr.mxu0 0.0
  %73 = vmatpush1.msra.mxu0 %v33
  %74 = vmatprep.subr.mxu0 0.0
  %75 = vmatpush1.msra.mxu0 %v32
  %76 = vmatprep.subr.mxu0 0.0
  %77 = vmatpush1.msra.mxu0 %v31
  %78 = vmatprep.subr.mxu0 0.0
  %79 = vmatpush1.msra.mxu0 %v30
  %80 = vmatprep.subr.mxu0 0.0
  %81 = vmatpush2.msra.mxu0 0.0
  %82 = vmatprep.subr.mxu0 0.0
  %83 = vmatpush2.msra.mxu0 0.0
  %84 = vmatprep.subr.mxu0 0.0
  %85 = vmatpush2.msra.mxu0 0.0
  %86 = vmatprep.subr.mxu0 0.0
  %87 = vmatpush2.msra.mxu0 0.0
  %88 = vmatprep.subr.mxu0 0.0
  %89 = vmatpush2.msra.mxu0 0.0
  %90 = vmatprep.subr.mxu0 0.0
  %91 = vmatpush2.msra.mxu0 0.0
  %92 = vmatprep.subr.mxu0 0.0
  %93 = vmatpush2.msra.mxu0 0.0
  %94 = vmatprep.subr.mxu0 0.0
  %95 = vmatpush2.msra.mxu0 0.0
  %96 = vmatprep.subr.mxu0 0.0
  %97 = vmatpush2.msra.mxu0 0.0
  %98 = vmatprep.subr.mxu0 0.0
  %99 = vmatpush2.msra.mxu0 0.0
  %100 = vmatprep.subr.mxu0 0.0
  %101 = vmatpush2.msra.mxu0 0.0
  %102 = vmatprep.subr.mxu0 0.0
  %103 = vmatpush2.msra.mxu0 0.0
  %104 = vmatprep.subr.mxu0 0.0
  %105 = vmatpush2.msra.mxu0 0.0
  %106 = vmatprep.subr.mxu0 0.0
  %107 = vmatpush2.msra.mxu0 0.0
  %108 = vmatprep.subr.mxu0 0.0
  %109 = vmatpush2.msra.mxu0 0.0
  %110 = vmatprep.subr.mxu0 0.0
  %111 = vmatpush2.msra.mxu0 0.0
  %112 = vmatprep.mubr.f32.mxu0 0.0
  %113 = vmatmul.mubr.f32.gmra.mxu0 %v43
  %v114 = vpop.f32.mrf.mxu0
  %v115 = vadd.f32 %v39, %v114
  %v116 = vpop.f32.mrf.mxu0
  %117 = vmatprep.mubr.f32.mxu0 0.0
  %118 = vmatmul.mubr.f32.gmra.mxu0 %v46
  %v119 = vpop.f32.mrf.mxu0
  %v120 = vadd.f32 %v39, %v119
  %v121 = vpop.f32.mrf.mxu0
  %122 = vdwg.mxu0
  %v123 = vmax.f32 %v115, 0.0
  %v124 = vmax.f32 %v120, 0.0
  %v125 = vld [vmem:[%s3] sm:$0xff]
  %v126 = vld [vmem:[%s3 + $0x8] sm:$0xff]
  %v127 = vld [vmem:[%s3 + $0x10] sm:$0xff]
  %v128 = vld [vmem:[%s3 + $0x18] sm:$0xff]
  %v129 = vld [vmem:[%s3 + $0x20] sm:$0xff]
  %v130 = vld [vmem:[%s3 + $0x28] sm:$0xff]
  %v131 = vld [vmem:[%s3 + $0x30] sm:$0xff]
  %v132 = vld [vmem:[%s3 + $0x38] sm:$0xff]
  %v133 = vld [vmem:[%s3 + $0x40] sm:$0xff]
  %v134 = vld [vmem:[%s3 + $0x48] sm:$0xff]
  %v135 = vld [vmem:[%s3 + $0x50] sm:$0xff]
  %v136 = vld [vmem:[%s3 + $0x58] sm:$0xff]
  %v137 = vld [vmem:[%s3 + $0x60] sm:$0xff]
  %v138 = vld [vmem:[%s3 + $0x68] sm:$0xff]
  %v139 = vld [vmem:[%s3 + $0x70] sm:$0xff]
  %v140 = vld [vmem:[%s3 + $0x78] sm:$0xff]
  %v141 = vld [vmem:[%s4] sm:$0x1]
  %v143 = vlaneseq
  %v144 = vshrl.u32 %v143, 7
  %v145 = vsub.s32 0, %v144
  %v146 = vrot.slane %v141, %v145
  %148 = vmatprep.subr.mxu0 0.0
  %149 = vmatpush1.msra.mxu0 %v140
  %150 = vmatprep.subr.mxu0 0.0
  %151 = vmatpush1.msra.mxu0 %v139
  %152 = vmatprep.subr.mxu0 0.0
  %153 = vmatpush1.msra.mxu0 %v138
  %154 = vmatprep.subr.mxu0 0.0
  %155 = vmatpush1.msra.mxu0 %v137
  %156 = vmatprep.subr.mxu0 0.0
  %157 = vmatpush1.msra.mxu0 %v136
  %158 = vmatprep.subr.mxu0 0.0
  %159 = vmatpush1.msra.mxu0 %v135
  %160 = vmatprep.subr.mxu0 0.0
  %161 = vmatpush1.msra.mxu0 %v134
  %162 = vmatprep.subr.mxu0 0.0
  %163 = vmatpush1.msra.mxu0 %v133
  %164 = vmatprep.subr.mxu0 0.0
  %165 = vmatpush1.msra.mxu0 %v132
  %166 = vmatprep.subr.mxu0 0.0
  %167 = vmatpush1.msra.mxu0 %v131
  %168 = vmatprep.subr.mxu0 0.0
  %169 = vmatpush1.msra.mxu0 %v130
  %170 = vmatprep.subr.mxu0 0.0
  %171 = vmatpush1.msra.mxu0 %v129
  %172 = vmatprep.subr.mxu0 0.0
  %173 = vmatpush1.msra.mxu0 %v128
  %174 = vmatprep.subr.mxu0 0.0
  %175 = vmatpush1.msra.mxu0 %v127
  %176 = vmatprep.subr.mxu0 0.0
  %177 = vmatpush1.msra.mxu0 %v126
  %178 = vmatprep.subr.mxu0 0.0
  %179 = vmatpush1.msra.mxu0 %v125
  %180 = vmatprep.subr.mxu0 0.0
  %181 = vmatpush2.msra.mxu0 0.0
  %182 = vmatprep.subr.mxu0 0.0
  %183 = vmatpush2.msra.mxu0 0.0
  %184 = vmatprep.subr.mxu0 0.0
  %185 = vmatpush2.msra.mxu0 0.0
  %186 = vmatprep.subr.mxu0 0.0
  %187 = vmatpush2.msra.mxu0 0.0
  %188 = vmatprep.subr.mxu0 0.0
  %189 = vmatpush2.msra.mxu0 0.0
  %190 = vmatprep.subr.mxu0 0.0
  %191 = vmatpush2.msra.mxu0 0.0
  %192 = vmatprep.subr.mxu0 0.0
  %193 = vmatpush2.msra.mxu0 0.0
  %194 = vmatprep.subr.mxu0 0.0
  %195 = vmatpush2.msra.mxu0 0.0
  %196 = vmatprep.subr.mxu0 0.0
  %197 = vmatpush2.msra.mxu0 0.0
  %198 = vmatprep.subr.mxu0 0.0
  %199 = vmatpush2.msra.mxu0 0.0
  %200 = vmatprep.subr.mxu0 0.0
  %201 = vmatpush2.msra.mxu0 0.0
  %202 = vmatprep.subr.mxu0 0.0
  %203 = vmatpush2.msra.mxu0 0.0
  %204 = vmatprep.subr.mxu0 0.0
  %205 = vmatpush2.msra.mxu0 0.0
  %206 = vmatprep.subr.mxu0 0.0
  %207 = vmatpush2.msra.mxu0 0.0
  %208 = vmatprep.subr.mxu0 0.0
  %209 = vmatpush2.msra.mxu0 0.0
  %210 = vmatprep.subr.mxu0 0.0
  %211 = vmatpush2.msra.mxu0 0.0
  %212 = vmatprep.mubr.f32.mxu0 0.0
  %213 = vmatmul.mubr.f32.gmra.mxu0 %v123
  %v214 = vpop.f32.mrf.mxu0
  %v215 = vadd.f32 %v146, %v214
  %v216 = vpop.f32.mrf.mxu0
  %217 = vmatprep.mubr.f32.mxu0 0.0
  %218 = vmatmul.mubr.f32.gmra.mxu0 %v124
  %v219 = vpop.f32.mrf.mxu0
  %v220 = vadd.f32 %v146, %v219
  %v221 = vpop.f32.mrf.mxu0
  %222 = vdwg.mxu0
  %v223 = vmax.f32 %v215, 0.0
  %v224 = vmax.f32 %v220, 0.0
  %v225 = vld [vmem:[%s5] sm:$0x1]
  %v227 = vlaneseq
  %v228 = vshrl.u32 %v227, 7
  %v229 = vsub.s32 0, %v228
  %v230 = vrot.slane %v225, %v229
  %v232 = vmul.f32 %v223, %v230
  %v233 = vmul.f32 %v224, %v230
  %vm234 = vcmask 523264
  %v235 = vsel %vm234, %v232, 0.0
  %236 = vadd.xlane.f32.xlu0 %v235
  %v237 = vpop.xlane.xlu0 %236
  %v238 = vsel %vm234, %v233, 0.0
  %239 = vadd.xlane.f32.xlu0 %v238
  %v240 = vpop.xlane.xlu0 %239
  %v241 = vld [vmem:[#allocation2] sm:$0x1]
  %v243 = vlaneseq
  %v244 = vshrl.u32 %v243, 7
  %v245 = vsub.s32 0, %v244
  %v246 = vrot.slane %v241, %v245
  %v248 = vadd.f32 %v237, %v246
  %v249 = vadd.f32 %v240, %v246
  %vm250 = vcmask 7168
  %251 = vst.msk [vmem:[%s7] sm:$0xff] %vm250, %v248
  %252 = vst.msk [vmem:[%s7 + $0x8] sm:$0xff] %vm250, %v249
  // Predicated region
  $region30: #{tpu_custom_call.1} parent=0 // pred_check
    _
  $region31: #{tpu_custom_call.1} parent=0 // pred_check_branch
    %254 = sbr.rel (0) target = $region33
  $region32: #{tpu_custom_call.1} parent=0 // pred_region
    _
  $region33: #{tpu_custom_call.1} parent=0 // pred_fallthru
    _
  // Predicated region
  $region34: #{tpu_custom_call.1} parent=0 // pred_check
    _
  $region35: #{tpu_custom_call.1} parent=0 // pred_check_branch
    %256 = sbr.rel (0) target = $region37
  $region36: #{tpu_custom_call.1} parent=0 // pred_region
    _
  $region37: #{tpu_custom_call.1} parent=0 // pred_fallthru
    _

</llo_original>
